<compile_context>
chip_gen: v7x
topology: tpu7x:2x2x1
jax: 0.10.0
libtpu: 0.0.40
codegen_flags: <defaults>
</compile_context>

<pallas_src>
import functools
import math
import numpy as np

import jax
import jax.numpy as jnp
from jax.experimental import pallas as pl
from jax.experimental.pallas import tpu as pltpu


_VMEM_LIMIT = 56 * 1024 * 1024   # headroom on v7x (64 MiB physical); > default scoped 32 MiB
_NEG_INF = -1e30                 # finite "-inf" for masked (padded) attention keys


# ----------------------------------------------------------------------------
# In-kernel math helpers (pure jnp, traced inside kernels)
# ----------------------------------------------------------------------------
def _erf_approx(x):
    # Abramowitz & Stegun 7.1.26, |abs error| < 1.5e-7.
    # TODO(synk): replace with lax.erf if/when Mosaic guarantees an erf lowering;
    # PyTorch F.gelu / nn.GELU() use the exact erf-based GELU.
    a1, a2, a3, a4, a5 = 0.254829592, -0.284496736, 1.421413741, -1.453152027, 1.061405429
    p = 0.3275911
    ax = jnp.abs(x)
    t = 1.0 / (1.0 + p * ax)
    poly = ((((a5 * t + a4) * t + a3) * t + a2) * t + a1) * t
    e = 1.0 - poly * jnp.exp(-ax * ax)
    return jnp.where(x < 0.0, -e, e)


def _gelu_exact(x):
    return 0.5 * x * (1.0 + _erf_approx(x * 0.7071067811865476))


def _layernorm(x, g, b, eps=1e-5):
    # PyTorch LayerNorm semantics (biased variance, eps inside sqrt), f32 stats.
    x32 = x.astype(jnp.float32)
    mu = jnp.mean(x32, axis=-1, keepdims=True)
    var = jnp.mean((x32 - mu) ** 2, axis=-1, keepdims=True)
    return (x32 - mu) * jax.lax.rsqrt(var + eps) * g + b


# ----------------------------------------------------------------------------
# Tiling helpers
# ----------------------------------------------------------------------------
def _round_up(n, m):
    return ((n + m - 1) // m) * m


def _pick_tile(n, target):
    """Largest divisor of n that is <= target AND a multiple of 8 (sublane aligned).

    Falls back to the full dimension (always layout-legal) rather than ever
    returning a non-8-aligned partial tile."""
    if n <= target:
        return n
    for d in range(target - target % 8, 7, -8):
        if n % d == 0:
            return d
    return n


# ----------------------------------------------------------------------------
# Kernel 1: Conv1d(k=3) + bias + GELU (+ optional fused positional-embedding add)
#   The 3 shifted/strided taps are folded into one (tt, 3*Cin_pad) @ (3*Cin_pad, Cout)
#   MXU contraction per time tile.
# ----------------------------------------------------------------------------
def _conv_gelu_kernel(xt_ref, w_ref, b_ref, *rest, add_pos):
    # xt_ref: (tt, Kp) bf16   w_ref: (Kp, Cout) bf16   b_ref: (1, Cout) f32
    if add_pos:
        pos_ref, o_ref = rest
    else:
        (o_ref,) = rest
    acc = jnp.dot(xt_ref[...], w_ref[...], preferred_element_type=jnp.float32)
    y = _gelu_exact(acc + b_ref[...])
    if add_pos:
        y = y + pos_ref[...]
    o_ref[...] = y.astype(o_ref.dtype)


def conv1d_gelu(x_btc, w_kio, bias, *, stride, pos=None, trunc_len=None,
                pad_out_to=None, out_dtype=jnp.float32, t_tile=256):
    # x_btc: (B, L, Cin) channel-last; pad=1, kernel=3 (matches nn.Conv1d args).
    B, L, Cin = x_btc.shape
    K, _, Cout = w_kio.shape
    pad = 1
    T_out = (L + 2 * pad - K) // stride + 1
    if trunc_len is not None:
        # Truncate *before* the positional add, matching `x = x[:, :1500]`.
        T_out = min(T_out, trunc_len)
    T_final = T_out if pad_out_to is None else pad_out_to
    assert T_final >= T_out

    # TODO(synk): the fused taps are still materialized in HBM (bf16, 3x input);
    # a halo-block / pl.ANY manual-DMA variant would remove this glue traffic.
    xp = jnp.pad(x_btc, ((0, 0), (pad, pad), (0, 0)))
    taps = jnp.concatenate(
        [jax.lax.slice_in_dim(xp, k, k + stride * (T_out - 1) + 1, stride=stride, axis=1)
         for k in range(K)],
        axis=-1,
    )                                                       # (B, T_out, K*Cin)
    Kc = K * Cin
    Kp = _round_up(Kc, 128)                                  # pad contraction to 128 lanes
    pad_t = T_final - T_out
    if Kp != Kc or pad_t:
        taps = jnp.pad(taps, ((0, 0), (0, pad_t), (0, Kp - Kc)))
    taps = taps.astype(jnp.bfloat16)

    wf = w_kio.reshape(Kc, Cout)                             # (K*Cin, Cout), matches tap order
    if Kp != Kc:
        wf = jnp.pad(wf, ((0, Kp - Kc), (0, 0)))
    wf = wf.astype(jnp.bfloat16)

    add_pos = pos is not None
    if add_pos:
        assert pos.shape == (T_final, Cout)

    tt = _pick_tile(T_final, t_tile)
    grid = (B, T_final // tt)

    in_specs = [
        pl.BlockSpec((None, tt, Kp), lambda b, t: (b, t, 0)),
        pl.BlockSpec((Kp, Cout), lambda b, t: (0, 0)),
        pl.BlockSpec((1, Cout), lambda b, t: (0, 0)),
    ]
    args = [taps, wf, bias]
    if add_pos:
        in_specs.append(pl.BlockSpec((tt, Cout), lambda b, t: (t, 0)))
        args.append(pos)

    return pl.pallas_call(
        functools.partial(_conv_gelu_kernel, add_pos=add_pos),
        grid=grid,
        in_specs=in_specs,
        out_specs=pl.BlockSpec((None, tt, Cout), lambda b, t: (b, t, 0)),
        out_shape=jax.ShapeDtypeStruct((B, T_final, Cout), out_dtype),
        compiler_params=pltpu.CompilerParams(
            dimension_semantics=("parallel", "parallel"),
            vmem_limit_bytes=_VMEM_LIMIT),
    )(*args)


# ----------------------------------------------------------------------------
# Kernel 2a: ln1(x) + fused Q/K/V projection (single (C, 3C) bf16 weight)
#   The attention scale (head_dim**-0.5) is pre-folded into the Q columns at init.
# ----------------------------------------------------------------------------
def _ln_qkv_kernel(x_ref, g_ref, b_ref, w_ref, bias_ref, q_ref, k_ref, v_ref):
    C = q_ref.shape[-1]
    h = _layernorm(x_ref[...], g_ref[...], b_ref[...])
    qkv = jnp.dot(h.astype(jnp.bfloat16), w_ref[...],
                  preferred_element_type=jnp.float32) + bias_ref[...]
    q_ref[...] = qkv[:, :C].astype(q_ref.dtype)
    k_ref[...] = qkv[:, C:2 * C].astype(k_ref.dtype)
    v_ref[...] = qkv[:, 2 * C:].astype(v_ref.dtype)


def ln_qkv(x, p, *, t_tile=256):
    B, T, C = x.shape
    tt = _pick_tile(T, t_tile)
    grid = (B, T // tt)
    xspec = pl.BlockSpec((None, tt, C), lambda b, t: (b, t, 0))
    vec_c = pl.BlockSpec((1, C), lambda b, t: (0, 0))
    out_spec = pl.BlockSpec((None, tt, C), lambda b, t: (b, t, 0))
    out_sd = jax.ShapeDtypeStruct((B, T, C), jnp.bfloat16)
    # TODO(synk): pipeline_mode=pl.Buffered(1) on the constant-index weight spec
    # would halve its VMEM footprint on v7x once verified on the target jax build.
    return pl.pallas_call(
        _ln_qkv_kernel,
        grid=grid,
        in_specs=[xspec, vec_c, vec_c,
                  pl.BlockSpec((C, 3 * C), lambda b, t: (0, 0)),
                  pl.BlockSpec((1, 3 * C), lambda b, t: (0, 0))],
        out_specs=(out_spec, out_spec, out_spec),
        out_shape=(out_sd, out_sd, out_sd),
        compiler_params=pltpu.CompilerParams(
            dimension_semantics=("parallel", "parallel"),
            vmem_limit_bytes=_VMEM_LIMIT),
    )(x, p["ln1_g"], p["ln1_b"], p["wqkv"], p["bqkv"])


# ----------------------------------------------------------------------------
# Kernel 2b: attention.  Encoder-scale T means full K/V fits VMEM per batch
#   element, so the kernel computes an exact softmax (no online rescales) and
#   processes *all heads* for a q-tile, emitting a lane-dense (tq, C) block
#   directly in (B, T, C) layout.  Padded key positions are masked via bias.
# ----------------------------------------------------------------------------
def _attention_kernel(q_ref, k_ref, v_ref, bias_ref, o_ref, *, n_head):
    # q_ref: (H, tq, D) bf16   k_ref/v_ref: (H, T, D) bf16   bias_ref: (1, T) f32
    bias = bias_ref[...]                                   # 0 for valid keys, -1e30 for pad
    outs = []
    for h in range(n_head):                                # static unroll over heads
        s = jax.lax.dot_general(q_ref[h], k_ref[h], (((1,), (1,)), ((), ())),
                                preferred_element_type=jnp.float32)      # (tq, T)
        s = s + bias
        m = jnp.max(s, axis=-1, keepdims=True)
        e = jnp.exp(s - m)
        l = jnp.sum(e, axis=-1, keepdims=True)
        ctx = jnp.dot(e.astype(jnp.bfloat16), v_ref[h],
                      preferred_element_type=jnp.float32)                # (tq, D)
        outs.append(ctx / l)                               # exact normalization
    # single lane-dense store (tq, H*D)
    o_ref[...] = jnp.concatenate(outs, axis=-1).astype(o_ref.dtype)


def attention(q, k, v, mask_bias, *, n_head, q_tile=256):
    B, T, C = q.shape
    H = n_head
    D = C // H

    def split_heads(t):   # (B, T, C) -> (B, H, T, D)
        # TODO(synk): could be folded into ln_qkv's out_specs with an in-kernel
        # relayout; kept as XLA glue for lowering robustness.
        return jnp.transpose(t.reshape(B, T, H, D), (0, 2, 1, 3))

    qh, kh, vh = split_heads(q), split_heads(k), split_heads(v)
    tq = _pick_tile(T, q_tile)
    grid = (B, T // tq)

    return pl.pallas_call(
        functools.partial(_attention_kernel, n_head=H),
        grid=grid,
        in_specs=[
            pl.BlockSpec((None, H, tq, D), lambda b, qi: (b, 0, qi, 0)),
            pl.BlockSpec((None, H, T, D), lambda b, qi: (b, 0, 0, 0)),   # full K per batch
            pl.BlockSpec((None, H, T, D), lambda b, qi: (b, 0, 0, 0)),   # full V per batch
            pl.BlockSpec((1, T), lambda b, qi: (0, 0)),                  # key-pad mask bias
        ],
        out_specs=pl.BlockSpec((None, tq, C), lambda b, qi: (b, qi, 0)),
        out_shape=jax.ShapeDtypeStruct((B, T, C), jnp.bfloat16),
        compiler_params=pltpu.CompilerParams(
            dimension_semantics=("parallel", "parallel"),
            vmem_limit_bytes=_VMEM_LIMIT),
    )(qh, kh, vh, mask_bias)


# ----------------------------------------------------------------------------
# Kernel 2c: attention out-projection + residual, ln2, MLP (ff-tiled) + residual
#   grid = (B, T_tiles, FF_tiles); the FF axis accumulates into a VMEM scratch.
# ----------------------------------------------------------------------------
def _attn_out_mlp_kernel(x_ref, ctx_ref, wo_ref, bo_ref, g2_ref, b2ln_ref,
                         w1_ref, b1_ref, w2_ref, b2_ref, o_ref,
                         h_bf_ref, acc_ref):
    fi = pl.program_id(2)

    @pl.when(fi == 0)
    def _():
        # x2 = x + ctx @ Wo + bo
        x2 = (x_ref[...]
              + jnp.dot(ctx_ref[...], wo_ref[...], preferred_element_type=jnp.float32)
              + bo_ref[...])
        acc_ref[...] = x2 + b2_ref[...]          # final MLP bias added exactly once
        h_bf_ref[...] = _layernorm(x2, g2_ref[...], b2ln_ref[...]).astype(jnp.bfloat16)

    hidden = _gelu_exact(
        jnp.dot(h_bf_ref[...], w1_ref[...], preferred_element_type=jnp.float32)
        + b1_ref[...])
    acc_ref[...] += jnp.dot(hidden.astype(jnp.bfloat16), w2_ref[...],
                            preferred_element_type=jnp.float32)

    @pl.when(fi == pl.num_programs(2) - 1)
    def _():
        o_ref[...] = acc_ref[...].astype(o_ref.dtype)


def attn_out_mlp(x, ctx, p, *, t_tile=256, ff_tile=1024):
    B, T, C = x.shape
    Fh = p["w1"].shape[1]                       # 4*C
    tt = _pick_tile(T, t_tile)
    tf = _pick_tile(Fh, ff_tile)
    grid = (B, T // tt, Fh // tf)
    return pl.pallas_call(
        _attn_out_mlp_kernel,
        grid=grid,
        in_specs=[
            pl.BlockSpec((None, tt, C), lambda b, t, f: (b, t, 0)),   # residual x (f32)
            pl.BlockSpec((None, tt, C), lambda b, t, f: (b, t, 0)),   # attention context (bf16)
            pl.BlockSpec((C, C), lambda b, t, f: (0, 0)),             # wo (bf16)
            pl.BlockSpec((1, C), lambda b, t, f: (0, 0)),             # bo
            pl.BlockSpec((1, C), lambda b, t, f: (0, 0)),             # ln2 gamma
            pl.BlockSpec((1, C), lambda b, t, f: (0, 0)),             # ln2 beta
            pl.BlockSpec((C, tf), lambda b, t, f: (0, f)),            # w1 ff tile (bf16)
            pl.BlockSpec((1, tf), lambda b, t, f: (0, f)),            # b1 ff tile
            pl.BlockSpec((tf, C), lambda b, t, f: (f, 0)),            # w2 ff tile (bf16)
            pl.BlockSpec((1, C), lambda b, t, f: (0, 0)),             # b2
        ],
        out_specs=pl.BlockSpec((None, tt, C), lambda b, t, f: (b, t, 0)),
        out_shape=jax.ShapeDtypeStruct((B, T, C), jnp.float32),
        scratch_shapes=[
            pltpu.VMEM((tt, C), jnp.bfloat16),   # ln2(x2) in bf16
            pltpu.VMEM((tt, C), jnp.float32),    # output accumulator
        ],
        compiler_params=pltpu.CompilerParams(
            dimension_semantics=("parallel", "parallel", "arbitrary"),
            vmem_limit_bytes=_VMEM_LIMIT),
    )(x, ctx, p["wo"], p["bo"], p["ln2_g"], p["ln2_b"],
      p["w1"], p["b1"], p["w2"], p["b2"])


def residual_block(x, blk, mask_bias, n_head):
    q, k, v = ln_qkv(x, blk)
    ctx = attention(q, k, v, mask_bias, n_head=n_head)
    return attn_out_mlp(x, ctx, blk)


# ----------------------------------------------------------------------------
# Kernel 3: final LayerNorm (ln_post), tiled over (B, T)
# ----------------------------------------------------------------------------
def _layernorm_kernel(x_ref, g_ref, b_ref, o_ref):
    o_ref[...] = _layernorm(x_ref[...], g_ref[...], b_ref[...]).astype(o_ref.dtype)


def layernorm_call(x, g, b, *, t_tile=512):
    B, T, C = x.shape
    tt = _pick_tile(T, t_tile)
    grid = (B, T // tt)
    return pl.pallas_call(
        _layernorm_kernel,
        grid=grid,
        in_specs=[
            pl.BlockSpec((None, tt, C), lambda bb, t: (bb, t, 0)),
            pl.BlockSpec((1, C), lambda bb, t: (0, 0)),
            pl.BlockSpec((1, C), lambda bb, t: (0, 0)),
        ],
        out_specs=pl.BlockSpec((None, tt, C), lambda bb, t: (bb, t, 0)),
        out_shape=jax.ShapeDtypeStruct((B, T, C), jnp.float32),
        compiler_params=pltpu.CompilerParams(
            dimension_semantics=("parallel", "parallel"),
            vmem_limit_bytes=_VMEM_LIMIT),
    )(x, g, b)


# ----------------------------------------------------------------------------
# Parameter setup (deterministic, synthetic) and full forward
# ----------------------------------------------------------------------------
def sinusoids(length, channels, max_timescale=10000):
    assert channels % 2 == 0
    log_timescale_increment = np.log(max_timescale) / (channels // 2 - 1)
    inv_timescales = jnp.exp(-log_timescale_increment *
                             jnp.arange(channels // 2, dtype=jnp.float32))
    scaled_time = jnp.arange(length, dtype=jnp.float32)[:, None] * inv_timescales[None, :]
    return jnp.concatenate([jnp.sin(scaled_time), jnp.cos(scaled_time)], axis=1)


def init_params(key, n_mels, n_ctx, n_state, n_head, n_layer):
    C = n_state
    D = C // n_head
    ks = iter(jax.random.split(key, 8 + 12 * n_layer))

    def w(shape, scale=0.02):
        return (scale * jax.random.normal(next(ks), shape)).astype(jnp.float32)

    params = dict(
        # conv weights stored as (K, Cin, Cout) == torch weight (Cout, Cin, K) transposed
        conv1_w=w((3, n_mels, C)), conv1_b=w((1, C)),
        conv2_w=w((3, C, C)), conv2_b=w((1, C)),
        pos=sinusoids(n_ctx, C),
        ln_post_g=jnp.ones((1, C), jnp.float32),
        ln_post_b=jnp.zeros((1, C), jnp.float32),
        blocks=[],
    )
    sm_scale = 1.0 / math.sqrt(D)      # == (D**-0.25 applied to both q and k) folded into q
    for _ in range(n_layer):
        # Linear weights stored as (in, out): kernels compute x @ W (== F.linear with W.T).
        wq, wk, wv = w((C, C)), w((C, C)), w((C, C))
        bq, bv = w((1, C)), w((1, C))                      # key projection has no bias
        wqkv = jnp.concatenate([wq * sm_scale, wk, wv], axis=1).astype(jnp.bfloat16)
        bqkv = jnp.concatenate([bq * sm_scale, jnp.zeros((1, C), jnp.float32), bv], axis=1)
        params["blocks"].append(dict(
            ln1_g=jnp.ones((1, C), jnp.float32), ln1_b=jnp.zeros((1, C), jnp.float32),
            wqkv=wqkv, bqkv=bqkv,                          # pre-cast bf16 / pre-scaled once
            wo=w((C, C)).astype(jnp.bfloat16), bo=w((1, C)),
            ln2_g=jnp.ones((1, C), jnp.float32), ln2_b=jnp.zeros((1, C), jnp.float32),
            w1=w((C, 4 * C)).astype(jnp.bfloat16), b1=w((1, 4 * C)),
            w2=w((4 * C, C)).astype(jnp.bfloat16), b2=w((1, C)),
        ))
    return params


def audio_encoder_forward(x_ncl, params, n_head):
    # Input is PyTorch NCL (B, n_mels, L); kernels use channel-last (B, T, C).
    x = jnp.transpose(x_ncl, (0, 2, 1)).astype(jnp.float32)      # (B, L, n_mels)

    # conv1 (stride 1): bf16 output is lossless w.r.t. the downstream bf16 tap matmul.
    x = conv1d_gelu(x, params["conv1_w"], params["conv1_b"], stride=1,
                    out_dtype=jnp.bfloat16)

    # conv2 (stride 2): truncate to <=1500 frames *before* the positional add
    # (matches the reference), then pad time to a multiple of 128 so every
    # downstream kernel gets clean (8,128)-aligned tiles (T=1500 -> 1536 for real
    # Whisper).  Padded key positions are masked in attention and sliced off at
    # the end, so the padding never affects valid outputs.
    B, L1, C = x.shape
    T_conv = (L1 + 2 - 3) // 2 + 1
    T_valid = min(T_conv, 1500)
    pos = params["pos"]
    assert pos.shape[0] >= T_valid, "positional embedding shorter than conv2 output"
    T_pad = _round_up(T_valid, 128)
    pos_p = jnp.pad(pos[:T_valid].astype(jnp.float32), ((0, T_pad - T_valid), (0, 0)))
    x = conv1d_gelu(x, params["conv2_w"], params["conv2_b"], stride=2,
                    pos=pos_p, trunc_len=T_valid, pad_out_to=T_pad,
                    out_dtype=jnp.float32)

    mask_bias = jnp.where(jnp.arange(T_pad) < T_valid, 0.0, _NEG_INF
                          ).astype(jnp.float32).reshape(1, T_pad)

    for blk in params["blocks"]:
        x = residual_block(x, blk, mask_bias, n_head)

    x = layernorm_call(x, params["ln_post_g"], params["ln_post_b"])
    return x[:, :T_valid, :]


if __name__ == "__main__":
    B, n_mels, n_state, n_head, n_layer = 2, 8, 32, 4, 2
    L = 16                                    # input mel frames
    n_ctx = (L + 2 - 3) // 2 + 1              # 8 frames after the stride-2 conv

    key = jax.random.PRNGKey(0)
    kx, kp = jax.random.split(key)
    x = jax.random.normal(kx, (B, n_mels, L), dtype=jnp.float32)  # (batch, n_mels, n_ctx*2)
    params = init_params(kp, n_mels, n_ctx, n_state, n_head, n_layer)

    out = audio_encoder_forward(x, params, n_head)
    out = jax.block_until_ready(out)
    assert out.shape == (B, n_ctx, n_state)
    assert bool(jnp.all(jnp.isfinite(out)))
    print("KERNEL_OK")
</pallas_src>

<mosaic_0001>
module attributes {stable_mosaic.version = 11 : i64} {
  func.func @_conv_gelu_kernel(%arg0: i32, %arg1: i32, %arg2: memref<1x16x128xbf16, #tpu.memory_space<vmem>>, %arg3: memref<128x32xbf16, #tpu.memory_space<vmem>>, %arg4: memref<1x32xf32, #tpu.memory_space<vmem>>, %arg5: memref<1x16x32xbf16, #tpu.memory_space<vmem>>) attributes {dimension_semantics = [#tpu.dimension_semantics<parallel>, #tpu.dimension_semantics<parallel>], iteration_bounds = array<i64: 2, 1>, scalar_prefetch = 0 : i64, scratch_operands = 0 : i64, tpu.core_type = #tpu.core_type<tc>, window_params = [{transform_indices = @transform_0, window_bounds = array<i64: 1, 16, 128>}, {pipeline_mode = #tpu.pipeline_mode<synchronous>, transform_indices = @transform_1, window_bounds = array<i64: 128, 32>}, {pipeline_mode = #tpu.pipeline_mode<synchronous>, transform_indices = @transform_2, window_bounds = array<i64: 1, 32>}, {transform_indices = @transform_3, window_bounds = array<i64: 1, 16, 32>}]} {
    %c0 = arith.constant 0 : index
    %c0_0 = arith.constant 0 : index
    %c0_1 = arith.constant 0 : index
    %0 = vector.load %arg2[%c0, %c0_0, %c0_1] : memref<1x16x128xbf16, #tpu.memory_space<vmem>>, vector<1x16x128xbf16>
    %1 = vector.shape_cast %0 : vector<1x16x128xbf16> to vector<16x128xbf16>
    %c0_2 = arith.constant 0 : index
    %c0_3 = arith.constant 0 : index
    %2 = vector.load %arg3[%c0_2, %c0_3] : memref<128x32xbf16, #tpu.memory_space<vmem>>, vector<128x32xbf16>
    %cst = arith.constant dense<0.000000e+00> : vector<16x32xf32>
    %3 = tpu.matmul %1, %2, %cst {dimension_numbers = #tpu.dot_dimension_numbers<[1], [0], [0], [1], [0, 0, 1, 1], [], []>} : vector<16x128xbf16>, vector<128x32xbf16>, vector<16x32xf32> -> vector<16x32xf32>
    %c0_4 = arith.constant 0 : index
    %c0_5 = arith.constant 0 : index
    %4 = vector.load %arg4[%c0_4, %c0_5] : memref<1x32xf32, #tpu.memory_space<vmem>>, vector<1x32xf32>
    %5 = vector.broadcast %4 : vector<1x32xf32> to vector<16x32xf32>
    %6 = arith.addf %3, %5 : vector<16x32xf32>
    %cst_6 = arith.constant 5.000000e-01 : f32
    %7 = vector.broadcast %cst_6 : f32 to vector<16x32xf32>
    %8 = arith.mulf %7, %6 : vector<16x32xf32>
    %cst_7 = arith.constant 0.707106769 : f32
    %9 = vector.broadcast %cst_7 : f32 to vector<16x32xf32>
    %10 = arith.mulf %6, %9 : vector<16x32xf32>
    %11 = math.absf %10 : vector<16x32xf32>
    %cst_8 = arith.constant 0.327591091 : f32
    %12 = vector.broadcast %cst_8 : f32 to vector<16x32xf32>
    %13 = arith.mulf %12, %11 : vector<16x32xf32>
    %cst_9 = arith.constant 1.000000e+00 : f32
    %14 = vector.broadcast %cst_9 : f32 to vector<16x32xf32>
    %15 = arith.addf %14, %13 : vector<16x32xf32>
    %cst_10 = arith.constant 1.000000e+00 : f32
    %16 = vector.broadcast %cst_10 : f32 to vector<16x32xf32>
    %17 = arith.divf %16, %15 : vector<16x32xf32>
    %cst_11 = arith.constant 1.06140542 : f32
    %18 = vector.broadcast %cst_11 : f32 to vector<16x32xf32>
    %19 = arith.mulf %18, %17 : vector<16x32xf32>
    %cst_12 = arith.constant -1.45315206 : f32
    %20 = vector.broadcast %cst_12 : f32 to vector<16x32xf32>
    %21 = arith.addf %19, %20 : vector<16x32xf32>
    %22 = arith.mulf %21, %17 : vector<16x32xf32>
    %cst_13 = arith.constant 1.42141378 : f32
    %23 = vector.broadcast %cst_13 : f32 to vector<16x32xf32>
    %24 = arith.addf %22, %23 : vector<16x32xf32>
    %25 = arith.mulf %24, %17 : vector<16x32xf32>
    %cst_14 = arith.constant -0.284496725 : f32
    %26 = vector.broadcast %cst_14 : f32 to vector<16x32xf32>
    %27 = arith.addf %25, %26 : vector<16x32xf32>
    %28 = arith.mulf %27, %17 : vector<16x32xf32>
    %cst_15 = arith.constant 0.254829586 : f32
    %29 = vector.broadcast %cst_15 : f32 to vector<16x32xf32>
    %30 = arith.addf %28, %29 : vector<16x32xf32>
    %31 = arith.mulf %30, %17 : vector<16x32xf32>
    %cst_16 = arith.constant 0.000000e+00 : f32
    %32 = vector.broadcast %cst_16 : f32 to vector<16x32xf32>
    %33 = arith.subf %32, %11 : vector<16x32xf32>
    %34 = arith.mulf %33, %11 : vector<16x32xf32>
    %35 = math.exp %34 : vector<16x32xf32>
    %36 = arith.mulf %31, %35 : vector<16x32xf32>
    %cst_17 = arith.constant 1.000000e+00 : f32
    %37 = vector.broadcast %cst_17 : f32 to vector<16x32xf32>
    %38 = arith.subf %37, %36 : vector<16x32xf32>
    %cst_18 = arith.constant 0.000000e+00 : f32
    %39 = vector.broadcast %cst_18 : f32 to vector<16x32xf32>
    %40 = arith.cmpf olt, %10, %39 : vector<16x32xf32>
    %cst_19 = arith.constant 0.000000e+00 : f32
    %41 = vector.broadcast %cst_19 : f32 to vector<16x32xf32>
    %42 = arith.subf %41, %38 : vector<16x32xf32>
    %43 = arith.select %40, %42, %38 : vector<16x32xi1>, vector<16x32xf32>
    %cst_20 = arith.constant 1.000000e+00 : f32
    %44 = vector.broadcast %cst_20 : f32 to vector<16x32xf32>
    %45 = arith.addf %44, %43 : vector<16x32xf32>
    %46 = arith.mulf %8, %45 : vector<16x32xf32>
    %47 = arith.truncf %46 : vector<16x32xf32> to vector<16x32xbf16>
    %c0_21 = arith.constant 0 : index
    %c0_22 = arith.constant 0 : index
    %c0_23 = arith.constant 0 : index
    %48 = vector.load %arg5[%c0_21, %c0_22, %c0_23] : memref<1x16x32xbf16, #tpu.memory_space<vmem>>, vector<1x16x32xbf16>
    %49 = vector.shape_cast %48 : vector<1x16x32xbf16> to vector<16x32xbf16>
    %50 = vector.shape_cast %47 : vector<16x32xbf16> to vector<1x16x32xbf16>
    tpu.vector_store %arg5[%c0_21, %c0_22, %c0_23], %50 {strides = array<i32>} : memref<1x16x32xbf16, #tpu.memory_space<vmem>>, vector<1x16x32xbf16>,
    return
  }
  func.func @transform_0(%arg0: i32, %arg1: i32) -> (i32, i32, i32) {
    %c0_i32 = arith.constant 0 : i32
    %c0_i32_0 = arith.constant 0 : i32
    return %arg0, %arg1, %c0_i32 : i32, i32, i32
  }
  func.func @transform_1(%arg0: i32, %arg1: i32) -> (i32, i32) {
    %c0_i32 = arith.constant 0 : i32
    %c0_i32_0 = arith.constant 0 : i32
    %c0_i32_1 = arith.constant 0 : i32
    return %c0_i32, %c0_i32_0 : i32, i32
  }
  func.func @transform_2(%arg0: i32, %arg1: i32) -> (i32, i32) {
    %c0_i32 = arith.constant 0 : i32
    %c0_i32_0 = arith.constant 0 : i32
    %c0_i32_1 = arith.constant 0 : i32
    return %c0_i32, %c0_i32_0 : i32, i32
  }
  func.func @transform_3(%arg0: i32, %arg1: i32) -> (i32, i32, i32) {
    %c0_i32 = arith.constant 0 : i32
    %c0_i32_0 = arith.constant 0 : i32
    return %arg0, %arg1, %c0_i32 : i32, i32, i32
  }
}

</mosaic_0001>

<llo_original>
// kernel: tpu_custom_call.1
$region0: #{tpu_custom_call.1}
  #allocation0 [shape = 'u32[]', space=smem, size = 0x4, offset = 0x4, fixed_abs, tag = 'smem constant byte address 0x4 - core index']
  #allocation1 [shape = 'u32[144,128]{1,0:T(1,128)}', space=vmem, size = 0x12000, scoped, tag = 'internal scratch']
  %s0 = inlined_call_operand.vmem [shape: bf16[2,16,128], index: 0, kind: input, shape index: {}]
  %s1 = inlined_call_operand.vmem [shape: bf16[128,32], index: 1, kind: input, shape index: {}]
  %s2 = inlined_call_operand.vmem [shape: f32[1,32], index: 2, kind: input, shape index: {}]
  %s3 = inlined_call_operand.hbm [shape: bf16[2,16,32], index: 3, kind: output, shape index: {}]
  %s4 = sld [smem:[#allocation0]]
  $region45: #{tpu_custom_call.1} parent=0
    _
  %s6 = ssub.s32 1, %s4
  %s7 = scalar_select 0, %s6, %s4
  $region1: #{tpu_custom_call.1} parent=0
    #allocation2 [shape = 'u8[8192]{0}', space=vmem, size = 0x2000, scoped, tag = 'output window, operand 0']
    #allocation3 [shape = 's32[2]{0}', space=sflag, size = 0x8, scoped, tag = 'scoped memory for tpu_custom_call.1']
    %8 = vsyncpa [#allocation3], 0
    %s9 = scalar_lea.sflag [#allocation3], 1
    %10 = vsyncpa %s9, 0
    loop: start=0, step=1, limit=4
    $region2: #{tpu_custom_call.1} parent=1 // loop_pre_header
      _
    $region3: #{tpu_custom_call.1} parent=1 // loop_header
      %s12 = sphi 0, %s16
      %p13 = scmp.ge.s32.totalorder %s12, 4
      %s19 = sphi 0, %s31
      %s20 = sphi 0, %s27
      %s21 = sphi 0, %s19
      %s22 = sphi 0, %s20
      %s23 = sphi 0, %s21
      %s24 = sphi 0, %s22
      %s36 = sphi 0, %s38
      %s39 = sphi 0, %s36
      %s40 = sphi 0, %s39
      %s56 = sphi 0, %s40
      %s60 = sphi 0, %s60
      %s62 = sphi 0, %s60
      %s63 = sphi 0, %s62
      %s77 = sphi 0, %s63
      %s81 = sphi 0, %s81
      %s83 = sphi 0, %s81
      %s84 = sphi 0, %s83
      %s98 = sphi 0, %s84
      %s106 = sphi 0, %s108
      %s109 = sphi 0, %s106
      %s110 = sphi 0, %s109
      %s126 = sphi 0, %s110
    $region4: #{tpu_custom_call.1} parent=1 // loop_header_branch
      %15 = sbr.rel (%p13) target = $region8
    $region5: #{tpu_custom_call.1} parent=1 // loop_body
      %s17 = ssub.s32 %s12, 1
      %s18 = ssub.s32 %s12, 2
      %s25 = sadd.s32 1, %s20
      %p26 = scmp.ge.s32.totalorder %s25, 1
      %s27 = scalar_select %p26, 0, %s25
      %s28 = sadd.s32 1, %s19
      %s29 = scalar_select %p26, %s28, %s19
      %p30 = scmp.ge.s32.totalorder %s29, 2
      %s31 = scalar_select %p30, 0, %s29
      %s32 = ssub.s32 %s19, %s31
      %s33 = ssub.s32 %s20, %s27
      %s34 = sor.u32 %s32, %s33
      %p35 = scmp.eq.s32.totalorder %s34, 0
      %s37 = sadd.s32 %s36, 1
      %s38 = scalar_select %p35, %s36, %s37
      %p41 = pneg %p35
      %p42 = scmp.eq.s32.totalorder %s12, 1
      %p43 = por %p41, %p42
      %p44 = scmp.ne.s32.totalorder %s36, %s39
      %p45 = scmp.eq.s32.totalorder %s12, 0
      %p46 = por %p44, %p45
      %p47 = scmp.ne.s32.totalorder %s36, %s39
      %p48 = scmp.eq.s32.totalorder %s17, 1
      %p49 = por %p47, %p48
      %p50 = scmp.ne.s32.totalorder %s39, %s40
      %p51 = scmp.eq.s32.totalorder %s17, 0
      %p52 = por %p50, %p51
      %p53 = scmp.ne.s32.totalorder %s39, %s40
      %p54 = scmp.eq.s32.totalorder %s18, 1
      %p55 = por %p53, %p54
      %p57 = scmp.ne.s32.totalorder %s40, %s56
      %p58 = scmp.eq.s32.totalorder %s18, 0
      %p59 = por %p57, %p58
      %s61 = sadd.s32 %s60, 1
      %p64 = scmp.eq.s32.totalorder %s12, 1
      %p65 = scmp.ne.s32.totalorder %s60, %s62
      %p66 = scmp.eq.s32.totalorder %s12, 0
      %p67 = por %p65, %p66
      %p68 = scmp.ne.s32.totalorder %s60, %s62
      %p69 = scmp.eq.s32.totalorder %s17, 1
      %p70 = por %p68, %p69
      %p71 = scmp.ne.s32.totalorder %s62, %s63
      %p72 = scmp.eq.s32.totalorder %s17, 0
      %p73 = por %p71, %p72
      %p74 = scmp.ne.s32.totalorder %s62, %s63
      %p75 = scmp.eq.s32.totalorder %s18, 1
      %p76 = por %p74, %p75
      %p78 = scmp.ne.s32.totalorder %s63, %s77
      %p79 = scmp.eq.s32.totalorder %s18, 0
      %p80 = por %p78, %p79
      %s82 = sadd.s32 %s81, 1
      %p85 = scmp.eq.s32.totalorder %s12, 1
      %p86 = scmp.ne.s32.totalorder %s81, %s83
      %p87 = scmp.eq.s32.totalorder %s12, 0
      %p88 = por %p86, %p87
      %p89 = scmp.ne.s32.totalorder %s81, %s83
      %p90 = scmp.eq.s32.totalorder %s17, 1
      %p91 = por %p89, %p90
      %p92 = scmp.ne.s32.totalorder %s83, %s84
      %p93 = scmp.eq.s32.totalorder %s17, 0
      %p94 = por %p92, %p93
      %p95 = scmp.ne.s32.totalorder %s83, %s84
      %p96 = scmp.eq.s32.totalorder %s18, 1
      %p97 = por %p95, %p96
      %p99 = scmp.ne.s32.totalorder %s84, %s98
      %p100 = scmp.eq.s32.totalorder %s18, 0
      %p101 = por %p99, %p100
      %s102 = ssub.s32 %s19, %s31
      %s103 = ssub.s32 %s20, %s27
      %s104 = sor.u32 %s102, %s103
      %p105 = scmp.eq.s32.totalorder %s104, 0
      %s107 = sadd.s32 %s106, 1
      %s108 = scalar_select %p105, %s106, %s107
      %p111 = pneg %p105
      %p112 = scmp.eq.s32.totalorder %s12, 1
      %p113 = por %p111, %p112
      %p114 = scmp.ne.s32.totalorder %s106, %s109
      %p115 = scmp.eq.s32.totalorder %s12, 0
      %p116 = por %p114, %p115
      %p117 = scmp.ne.s32.totalorder %s106, %s109
      %p118 = scmp.eq.s32.totalorder %s17, 1
      %p119 = por %p117, %p118
      %p120 = scmp.ne.s32.totalorder %s109, %s110
      %p121 = scmp.eq.s32.totalorder %s17, 0
      %p122 = por %p120, %p121
      %p123 = scmp.ne.s32.totalorder %s109, %s110
      %p124 = scmp.eq.s32.totalorder %s18, 1
      %p125 = por %p123, %p124
      %p127 = scmp.ne.s32.totalorder %s110, %s126
      %p128 = scmp.eq.s32.totalorder %s18, 0
      %p129 = por %p127, %p128
      %p130 = scmp.le.s32.totalorder 1, %s12
      %p131 = scmp.lt.s32.totalorder %s12, 3
      %p132 = pnand %p130, %p131
      %p133 = pneg %p132
      // Predicated region
      $region9: #{tpu_custom_call.1} parent=5 // pred_check
        _
      $region10: #{tpu_custom_call.1} parent=5 // pred_check_branch
        %135 = sbr.rel (%p132) target = $region12
      $region11: #{tpu_custom_call.1} parent=5 // pred_region
        %s136 = ssub.s32 %s12, 1
        // Predicated region
        $region13: #{tpu_custom_call.1} parent=11 // pred_check
          %p137 = pneg %p73
        $region14: #{tpu_custom_call.1} parent=11 // pred_check_branch
          %139 = sbr.rel (%p137) target = $region16
        $region15: #{tpu_custom_call.1} parent=11 // pred_region
          _
        $region16: #{tpu_custom_call.1} parent=11 // pred_fallthru
          _
        // Predicated region
        $region17: #{tpu_custom_call.1} parent=11 // pred_check
          %p140 = pneg %p94
        $region18: #{tpu_custom_call.1} parent=11 // pred_check_branch
          %142 = sbr.rel (%p140) target = $region20
        $region19: #{tpu_custom_call.1} parent=11 // pred_region
          _
        $region20: #{tpu_custom_call.1} parent=11 // pred_fallthru
          _
      $region12: #{tpu_custom_call.1} parent=5 // pred_fallthru
        _
      %p143 = scmp.lt.s32.totalorder %s12, 2
      // Predicated region
      $region21: #{tpu_custom_call.1} parent=5 // pred_check
        %p144 = pneg %p143
      $region22: #{tpu_custom_call.1} parent=5 // pred_check_branch
        %146 = sbr.rel (%p144) target = $region24
      $region23: #{tpu_custom_call.1} parent=5 // pred_region
        // Predicated region
        $region25: #{tpu_custom_call.1} parent=23 // pred_check
          %p147 = pneg %p46
        $region26: #{tpu_custom_call.1} parent=23 // pred_check_branch
          %149 = sbr.rel (%p147) target = $region28
        $region27: #{tpu_custom_call.1} parent=23 // pred_region
          %s150 = smul.u32 2, %s20
          %p151 = scmp.lt.s32.totalorder %s19, 1
          %s152 = scalar_select %p151, %s19, 1
          %p153 = scmp.lt.s32.totalorder %s150, 1
          %s154 = scalar_select %p153, %s150, 1
          %s155 = smul.addr %s152, 2
          %s156 = sadd.s32 %s154, %s155
          %s157 = smul.addr %s156, 4
          %s158 = scalar_lea.vmem %s0, %s157
          %s159 = smul.u32 2, %s20
        $region28: #{tpu_custom_call.1} parent=23 // pred_fallthru
          _
      $region24: #{tpu_custom_call.1} parent=5 // pred_fallthru
        _
      %p160 = scmp.le.s32.totalorder 1, %s12
      %p161 = scmp.lt.s32.totalorder %s12, 3
      %p162 = pnand %p160, %p161
      %p163 = pneg %p162
      // Predicated region
      $region29: #{tpu_custom_call.1} parent=5 // pred_check
        _
      $region30: #{tpu_custom_call.1} parent=5 // pred_check_branch
        %165 = sbr.rel (%p162) target = $region32
      $region31: #{tpu_custom_call.1} parent=5 // pred_region
        %s166 = ssub.s32 %s12, 1
        %s167 = smul.u32 2, %s22
        %p168 = scmp.lt.s32.totalorder %s21, 1
        %s169 = scalar_select %p168, %s21, 1
        %p170 = scmp.lt.s32.totalorder %s167, 1
        %s171 = scalar_select %p170, %s167, 1
        %s172 = smul.addr %s169, 2
        %s173 = sadd.s32 %s171, %s172
        %s174 = smul.addr %s173, 4
        %s175 = scalar_lea.vmem %s0, %s174
        %p176 = pneg %p52
        %p177 = pneg %p49
        %p178 = pneg %p73
        %p179 = pneg %p70
        %p180 = pneg %p94
        %p181 = pneg %p91
        %p182 = pneg %p122
        %p183 = pneg %p119
        %s184 = sand.u32 %s109, 1
        %s185 = scalar_lea.sflag [#allocation3], %s184
        %s186 = sand.u32 %s109, 1
        %s187 = smul.addr %s186, 8
        %s188 = scalar_lea.vmem [#allocation2], %s187
        %s189 = smul.u32 2, %s22
        %p190 = scmp.lt.s32.totalorder %s21, 1
        %s191 = scalar_select %p190, %s21, 1
        %p192 = scmp.lt.s32.totalorder %s189, 1
        %s193 = scalar_select %p192, %s189, 1
        %s194 = smul.addr %s191, 2
        %s195 = sadd.s32 %s193, %s194
        %s196 = smul.addr %s195, 4
        %s197 = scalar_lea.vmem %s0, %s196
        %s198 = smul.u32 2, %s22
        %s199 = smul.u32 2, %s22
        %v201 = vld [vmem:[%s197] sm:$0xf]
        %v202 = vld [vmem:[%s197 + $0x4] sm:$0xf]
        %v203 = vld [vmem:[%s1] sm:$0xf]
        %v204 = vld [vmem:[%s1 + $0x4] sm:$0xf]
        %v205 = vld [vmem:[%s1 + $0x8] sm:$0xf]
        %v206 = vld [vmem:[%s1 + $0xc] sm:$0xf]
        %v207 = vld [vmem:[%s1 + $0x10] sm:$0xf]
        %v208 = vld [vmem:[%s1 + $0x14] sm:$0xf]
        %v209 = vld [vmem:[%s1 + $0x18] sm:$0xf]
        %v210 = vld [vmem:[%s1 + $0x1c] sm:$0xf]
        %v211 = vld [vmem:[%s1 + $0x20] sm:$0xf]
        %v212 = vld [vmem:[%s1 + $0x24] sm:$0xf]
        %v213 = vld [vmem:[%s1 + $0x28] sm:$0xf]
        %v214 = vld [vmem:[%s1 + $0x2c] sm:$0xf]
        %v215 = vld [vmem:[%s1 + $0x30] sm:$0xf]
        %v216 = vld [vmem:[%s1 + $0x34] sm:$0xf]
        %v217 = vld [vmem:[%s1 + $0x38] sm:$0xf]
        %v218 = vld [vmem:[%s1 + $0x3c] sm:$0xf]
        %v219 = vld [vmem:[%s2] sm:$0x1]
        %v221 = vlaneseq
        %v222 = vshrl.u32 %v221, 7
        %v223 = vsub.s32 0, %v222
        %v224 = vrot.slane %v219, %v223
        %v228 = vunpack.c.l.b16 %v201
        %v229 = vunpack.c.l.b16 %v202
        %v230 = vpack.c.b16 %v229, %v228
        %v248 = vunpack.c.l.b16 %v203
        %v249 = vunpack.c.l.b16 %v204
        %v250 = vunpack.c.l.b16 %v205
        %v251 = vunpack.c.l.b16 %v206
        %v252 = vunpack.c.l.b16 %v207
        %v253 = vunpack.c.l.b16 %v208
        %v254 = vunpack.c.l.b16 %v209
        %v255 = vunpack.c.l.b16 %v210
        %v256 = vunpack.c.l.b16 %v211
        %v257 = vunpack.c.l.b16 %v212
        %v258 = vunpack.c.l.b16 %v213
        %v259 = vunpack.c.l.b16 %v214
        %v260 = vunpack.c.l.b16 %v215
        %v261 = vunpack.c.l.b16 %v216
        %v262 = vunpack.c.l.b16 %v217
        %v263 = vunpack.c.l.b16 %v218
        %v264 = vpack.c.b16 %v249, %v248
        %v265 = vpack.c.b16 %v251, %v250
        %v266 = vpack.c.b16 %v253, %v252
        %v267 = vpack.c.b16 %v255, %v254
        %v268 = vpack.c.b16 %v257, %v256
        %v269 = vpack.c.b16 %v259, %v258
        %v270 = vpack.c.b16 %v261, %v260
        %v271 = vpack.c.b16 %v263, %v262
        %280 = vmatprep.subr.bf16.mxu0 0
        %281 = vmatpush1.bf16.msra.mxu0 %v264
        %282 = vmatprep.subr.bf16.mxu0 0
        %283 = vmatpush1.bf16.msra.mxu0 %v265
        %284 = vmatprep.subr.bf16.mxu0 0
        %285 = vmatpush1.bf16.msra.mxu0 %v266
        %286 = vmatprep.subr.bf16.mxu0 0
        %287 = vmatpush1.bf16.msra.mxu0 %v267
        %288 = vmatprep.subr.bf16.mxu0 0
        %289 = vmatpush1.bf16.msra.mxu0 %v268
        %290 = vmatprep.subr.bf16.mxu0 0
        %291 = vmatpush1.bf16.msra.mxu0 %v269
        %292 = vmatprep.subr.bf16.mxu0 0
        %293 = vmatpush1.bf16.msra.mxu0 %v270
        %294 = vmatprep.subr.bf16.mxu0 0
        %295 = vmatpush1.bf16.msra.mxu0 %v271
        %296 = vmatprep.subr.bf16.mxu0 0
        %297 = vmatpush1.bf16.msra.mxu0 0
        %298 = vmatprep.subr.bf16.mxu0 0
        %299 = vmatpush1.bf16.msra.mxu0 0
        %300 = vmatprep.subr.bf16.mxu0 0
        %301 = vmatpush1.bf16.msra.mxu0 0
        %302 = vmatprep.subr.bf16.mxu0 0
        %303 = vmatpush1.bf16.msra.mxu0 0
        %304 = vmatprep.subr.bf16.mxu0 0
        %305 = vmatpush1.bf16.msra.mxu0 0
        %306 = vmatprep.subr.bf16.mxu0 0
        %307 = vmatpush1.bf16.msra.mxu0 0
        %308 = vmatprep.subr.bf16.mxu0 0
        %309 = vmatpush1.bf16.msra.mxu0 0
        %310 = vmatprep.subr.bf16.mxu0 0
        %311 = vmatpush1.bf16.msra.mxu0 0
        %312 = vmatprep.mubr.bf16.mxu0 0
        %313 = vmatmul.mubr.bf16.gmra.mrb[0].mxu0 %v230
        %v314 = vpop.f32.mrb[0].mxu0
        %v315 = vadd.f32 %v224, %v314
        %v316 = vpop.f32.mrb[0].mxu0
        %v317 = vpop.f32.mrb[0].mxu0
        %v318 = vadd.f32 %v224, %v317
        %v319 = vpop.f32.mrb[0].mxu0
        %320 = vdwg.mxu0
        %v321 = vmul.f32 %v315, 0.5
        %v322 = vmul.f32 %v318, 0.5
        %v323 = vmul.f32 %v315, 0.70710677
        %v324 = vmul.f32 %v318, 0.70710677
        %v325 = vand.u32 2147483647, %v323
        %v326 = vand.u32 2147483647, %v324
        %v327 = vmul.f32 %v325, 0.3275911
        %v328 = vmul.f32 %v326, 0.3275911
        %v329 = vadd.f32 %v327, 1.0
        %v330 = vadd.f32 %v328, 1.0
        %v331 = vrcp.pop %v329
        %v332 = vmul.f32 1.0, %v331
        %v333 = vrcp.pop %v330
        %v334 = vmul.f32 1.0, %v333
        %v335 = vmul.f32 %v332, 1.0614054
        %v336 = vmul.f32 %v334, 1.0614054
        %v337 = vadd.f32 %v335, -1.4531521
        %v338 = vadd.f32 %v336, -1.4531521
        %v339 = vmul.f32 %v337, %v332
        %v340 = vmul.f32 %v338, %v334
        %v341 = vadd.f32 %v339, 1.4214138
        %v342 = vadd.f32 %v340, 1.4214138
        %v343 = vmul.f32 %v341, %v332
        %v344 = vmul.f32 %v342, %v334
        %v345 = vadd.f32 %v343, -0.28449672
        %v346 = vadd.f32 %v344, -0.28449672
        %v347 = vmul.f32 %v345, %v332
        %v348 = vmul.f32 %v346, %v334
        %v349 = vadd.f32 %v347, 0.2548296
        %v350 = vadd.f32 %v348, 0.2548296
        %v351 = vmul.f32 %v349, %v332
        %v352 = vmul.f32 %v350, %v334
        %v353 = vsub.f32 0.0, %v325
        %v354 = vsub.f32 0.0, %v326
        %v355 = vmul.f32 %v353, %v325
        %v356 = vmul.f32 %v354, %v326
        %v357 = vmul.f32 %v355, 1.442695
        %v358 = vpow.pop %v357
        %v359 = vmul.f32 %v356, 1.442695
        %v360 = vpow.pop %v359
        %v361 = vmul.f32 %v351, %v358
        %v362 = vmul.f32 %v352, %v360
        %v363 = vsub.f32 1.0, %v361
        %v364 = vsub.f32 1.0, %v362
        %vm365 = vcmp.lt.f32.partialorder %v323, 0.0
        %vm366 = vcmp.lt.f32.partialorder %v324, 0.0
        %v367 = vsub.f32 0.0, %v363
        %v368 = vsub.f32 0.0, %v364
        %v369 = vsel %vm365, %v367, %v363
        %v370 = vsel %vm366, %v368, %v364
        %v371 = vadd.f32 %v369, 1.0
        %v372 = vadd.f32 %v370, 1.0
        %v373 = vmul.f32 %v321, %v371
        %v374 = vmul.f32 %v322, %v372
        %v375 = vpack.c.bf16 %v374, %v373
        %v377 = vunpack.c.l.b16 %v375
        %v378 = vunpack.c.h.b16 %v375
        %v379 = vpack.c.b16 %v377, %v377
        %v380 = vpack.c.b16 %v378, %v378
        %vm383 = vcmask 257024
        %384 = vst.msk [vmem:[%s188] sm:$0xf] %vm383, %v379
        %385 = vst.msk [vmem:[%s188 + $0x4] sm:$0xf] %vm383, %v380
        %s386 = sand.u32 %s109, 1
        %s387 = scalar_lea.sflag [#allocation3], %s386
        %s388 = sand.u32 %s109, 1
        %s389 = smul.addr %s388, 8
        %s390 = scalar_lea.vmem [#allocation2], %s389
        // Predicated region
        $region33: #{tpu_custom_call.1} parent=31 // pred_check
          %p391 = pneg %p119
        $region34: #{tpu_custom_call.1} parent=31 // pred_check_branch
          %393 = sbr.rel (%p391) target = $region36
        $region35: #{tpu_custom_call.1} parent=31 // pred_region
          %s394 = smul.u32 2, %s22
          %s396 = ssub.s32 128, 128
          %397 = vsyncadd %s387, %s396
          %s398 = smul.addr %s21, 2
          %s399 = sadd.s32 %s394, %s398
          %s400 = smul.addr %s399, 64
          %s401 = scalar_lea.hbm %s3, %s400
          %s402 = sshll.u32 %s390, 4
          %s403 = int_to_ptr.vmem [resolvable:$true] %s402
          %408 = dma.vmem_to_hbm [thread:$0]  %s403, 128, %s401, %s387, 64, 64, 4
        $region36: #{tpu_custom_call.1} parent=31 // pred_fallthru
          _
      $region32: #{tpu_custom_call.1} parent=5 // pred_fallthru
        _
      %p409 = scmp.le.s32.totalorder 2, %s12
      // Predicated region
      $region37: #{tpu_custom_call.1} parent=5 // pred_check
        %p410 = pneg %p409
      $region38: #{tpu_custom_call.1} parent=5 // pred_check_branch
        %412 = sbr.rel (%p410) target = $region40
      $region39: #{tpu_custom_call.1} parent=5 // pred_region
        %s413 = ssub.s32 %s12, 2
        // Predicated region
        $region41: #{tpu_custom_call.1} parent=39 // pred_check
          %p414 = pneg %p125
        $region42: #{tpu_custom_call.1} parent=39 // pred_check_branch
          %416 = sbr.rel (%p414) target = $region44
        $region43: #{tpu_custom_call.1} parent=39 // pred_region
          %s417 = sand.u32 %s110, 1
          %s418 = scalar_lea.sflag [#allocation3], %s417
          %s419 = sand.u32 %s110, 1
          %s420 = smul.addr %s419, 8
          %s421 = scalar_lea.vmem [#allocation2], %s420
          %422 = dma.done %s418, 128
        $region44: #{tpu_custom_call.1} parent=39 // pred_fallthru
          _
      $region40: #{tpu_custom_call.1} parent=5 // pred_fallthru
        _
    $region6: #{tpu_custom_call.1} parent=1 // loop_footer
      %s16 = sadd.s32 1, %s12
    $region7: #{tpu_custom_call.1} parent=1 // loop_footer_branch
      %11 = sbr.rel target = $region3
    $region8: #{tpu_custom_call.1} parent=1 // loop_exit
      _
    %423 = vsyncpa [#allocation3], 1
    %s424 = scalar_lea.sflag [#allocation3], 1
    %425 = vsyncpa %s424, 1

</llo_original>
